<compile_context>
chip_gen: v5e
topology: v5e:2x2
jax: 0.10.0
libtpu: 0.0.40
codegen_flags: <defaults>
</compile_context>

<pallas_src>
import math
import functools

import jax
import jax.numpy as jnp
from jax import lax
from jax.experimental import pallas as pl
from jax.experimental.pallas import tpu as pltpu

_SUBLANE = 8
# Scoped VMEM ceiling: comfortably under v7x's 64 MiB physical VMEM per
# TensorCore and well under v5e/v6e's 128 MiB.
_VMEM_LIMIT = 48 * 1024 * 1024
# Byte budgets used to derive tile sizes (keep headroom for compiler temps).
_PROJ_BLOCK_BUDGET = 24 * 1024 * 1024   # projection in/out blocks
_Q_BLOCK_BUDGET = 8 * 1024 * 1024       # flash: q-in / out / q scratch / acc
_KV_BLOCK_BUDGET = 12 * 1024 * 1024     # flash: double-buffered K+V blocks
_SCORE_BUDGET = 8 * 1024 * 1024         # flash: (tq, tk) f32 score/prob temps


def _pick_tile(n: int, cap: int) -> int:
    """Largest tile t dividing n with t <= cap.

    Prefers MXU/lane-friendly alignments (512/256/128) so the 256-wide MXU on
    v6e/v7x is filled, then falls back to sublane (8) alignment.  If no aligned
    divisor <= cap exists, returns n (full dim): a legal-but-large block beats a
    block shape that violates the (8, 128) tiling rule.
    """
    cap = int(min(cap, n))
    if n <= cap:
        return n
    for align in (512, 256, 128, _SUBLANE):
        t = (cap // align) * align
        while t >= align:
            if n % t == 0:
                return t
            t -= align
    return n


# ---------------------------------------------------------------------------
# Kernel 1: K/V projections, batch folded into the matmul M dimension.
# (Q projection is fused into the attention kernel below.)
# ---------------------------------------------------------------------------
def _project_kv_kernel(k_ref, v_ref, wk_ref, wv_ref, kp_ref, vp_ref):
    # x refs: (tm, D) f32 tiles of the flattened (B*S, D) inputs.
    # w refs: (D, D) bf16, resident across grid steps (constant index_map).
    k = k_ref[...].astype(jnp.bfloat16)
    v = v_ref[...].astype(jnp.bfloat16)
    kp_ref[...] = jnp.dot(
        k, wk_ref[...], preferred_element_type=jnp.float32).astype(kp_ref.dtype)
    vp_ref[...] = jnp.dot(
        v, wv_ref[...], preferred_element_type=jnp.float32).astype(vp_ref.dtype)


def _project_kv(k2d, v2d, wk_b, wv_b):
    BS, D = k2d.shape
    # Per-row VMEM: 2 double-buffered f32 inputs + 2 double-buffered bf16 outs.
    bytes_per_row = 2 * (D * 4 * 2) + 2 * (D * 2 * 2)
    tm_cap = max(_SUBLANE, _PROJ_BLOCK_BUDGET // bytes_per_row)
    tm = _pick_tile(BS, min(1024, tm_cap))

    x_spec = pl.BlockSpec((tm, D), lambda i: (i, 0))
    # Resident weights: constant index_map -> DMA'd once, held across steps.
    # TODO(synk): pipeline_mode=pl.Buffered(1) would drop the dead second
    # weight buffer (~2*D^2 bytes of headroom on v7x); omitted for compile
    # safety on older Pallas pipeline lowerings.
    w_spec = pl.BlockSpec((D, D), lambda i: (0, 0))
    out = jax.ShapeDtypeStruct((BS, D), jnp.bfloat16)
    return pl.pallas_call(
        _project_kv_kernel,
        out_shape=(out, out),
        grid_spec=pltpu.PrefetchScalarGridSpec(
            num_scalar_prefetch=0,
            grid=(BS // tm,),
            in_specs=[x_spec, x_spec, w_spec, w_spec],
            out_specs=[x_spec, x_spec],
        ),
        compiler_params=pltpu.CompilerParams(
            dimension_semantics=("parallel",),
            vmem_limit_bytes=_VMEM_LIMIT,
        ),
    )(k2d, v2d, wk_b, wv_b)


# ---------------------------------------------------------------------------
# Kernel 2: flash-style attention with the Q projection fused in.
# ---------------------------------------------------------------------------
def _flash_kernel(q_ref, wq_ref, k_ref, v_ref, o_ref,
                  q_sc, m_sc, l_sc, acc_sc, *, scale):
    kv = pl.program_id(2)

    @pl.when(kv == 0)
    def _():
        # Fused Q projection: each q tile is visited once per qi, so project it
        # at the first kv step (bf16 MXU, f32 acc), fold in the 1/sqrt(D)
        # softmax scale (S*D elements, not S*S), and cache in VMEM scratch.
        qp = jnp.dot(q_ref[0].astype(jnp.bfloat16), wq_ref[...],
                     preferred_element_type=jnp.float32)
        q_sc[...] = (qp * scale).astype(q_sc.dtype)
        m_sc[...] = jnp.full_like(m_sc, -jnp.inf)
        l_sc[...] = jnp.zeros_like(l_sc)
        acc_sc[...] = jnp.zeros_like(acc_sc)

    k = k_ref[0]   # (tk, D) bf16, pre-projected
    v = v_ref[0]   # (tk, D) bf16, pre-projected

    # QK^T: contract the last dims directly -- no materialized k.T / XLU transpose.
    s = lax.dot_general(q_sc[...], k, (((1,), (1,)), ((), ())),
                        preferred_element_type=jnp.float32)        # (tq, tk) f32

    m_prev = m_sc[...]
    m_new = jnp.maximum(m_prev, jnp.max(s, axis=-1, keepdims=True))
    alpha = jnp.exp(m_prev - m_new)
    p = jnp.exp(s - m_new)
    l_sc[...] = alpha * l_sc[...] + jnp.sum(p, axis=-1, keepdims=True)
    acc_sc[...] = alpha * acc_sc[...] + jnp.dot(
        p.astype(jnp.bfloat16), v, preferred_element_type=jnp.float32)
    m_sc[...] = m_new

    @pl.when(kv == pl.num_programs(2) - 1)
    def _():
        o_ref[0] = (acc_sc[...] *
                    pl.reciprocal(l_sc[...], approx=True)).astype(o_ref.dtype)


def _flash_attention(q, kp, vp, wq_b, *, scale, out_dtype):
    B, S, D = q.shape
    out_bytes = jnp.dtype(out_dtype).itemsize
    # q-tile bytes/row: raw-q f32 in (x2 buf) + out (x2 buf) + q scratch bf16
    # + f32 accumulator.
    q_row = D * (4 * 2 + out_bytes * 2 + 2 + 4)
    tq = _pick_tile(S, min(512, max(_SUBLANE, _Q_BLOCK_BUDGET // q_row)))
    # kv-tile bytes/row: projected K + V bf16, double buffered; also bounded by
    # the (tq, tk) f32 score/prob temporaries.  If S fits the cap, tk == S and
    # K/V are DMA'd exactly once per q tile (kv grid axis collapses to 1 step).
    kv_row = 2 * (D * 2 * 2)
    tk_cap = min(_KV_BLOCK_BUDGET // kv_row, _SCORE_BUDGET // (12 * tq))
    tk = _pick_tile(S, max(_SUBLANE, tk_cap))

    q_spec = pl.BlockSpec((1, tq, D), lambda b, qi, ki: (b, qi, 0))
    wq_spec = pl.BlockSpec((D, D), lambda b, qi, ki: (0, 0))
    kv_spec = pl.BlockSpec((1, tk, D), lambda b, qi, ki: (b, ki, 0))
    o_spec = pl.BlockSpec((1, tq, D), lambda b, qi, ki: (b, qi, 0))
    return pl.pallas_call(
        functools.partial(_flash_kernel, scale=scale),
        out_shape=jax.ShapeDtypeStruct((B, S, D), out_dtype),
        grid_spec=pltpu.PrefetchScalarGridSpec(
            num_scalar_prefetch=0,
            grid=(B, S // tq, S // tk),
            in_specs=[q_spec, wq_spec, kv_spec, kv_spec],
            out_specs=o_spec,
            scratch_shapes=[
                pltpu.VMEM((tq, D), jnp.bfloat16),   # projected + scaled q tile
                pltpu.VMEM((tq, 1), jnp.float32),    # running max  m
                pltpu.VMEM((tq, 1), jnp.float32),    # running denom l
                pltpu.VMEM((tq, D), jnp.float32),    # output accumulator
            ],
        ),
        compiler_params=pltpu.CompilerParams(
            # batch / q-tile axes shard across cores; kv is the reduction axis.
            dimension_semantics=("parallel", "parallel", "arbitrary"),
            vmem_limit_bytes=_VMEM_LIMIT,
        ),
    )(q, wq_b, kp, vp)


def attention(q, k, v, wq_t, wk_t, wv_t):
    B, S, D = q.shape
    # bf16 MXU operands (f32 accumulation in-kernel).  With jit'd constant
    # weights this cast constant-folds at weight-prep time.
    wq_b = wq_t.astype(jnp.bfloat16)
    wk_b = wk_t.astype(jnp.bfloat16)
    wv_b = wv_t.astype(jnp.bfloat16)

    kp, vp = _project_kv(k.reshape(B * S, D), v.reshape(B * S, D), wk_b, wv_b)
    kp = kp.reshape(B, S, D)
    vp = vp.reshape(B, S, D)
    # TODO(synk): for D < 128 the (tq, D) output stores are lane-masked; real
    # models with D >= 128 are lane-dense already (folding heads / D onto the
    # lane axis for tiny D would require an in-kernel relayout, skipped here).
    return _flash_attention(q, kp, vp, wq_b,
                            scale=1.0 / math.sqrt(D), out_dtype=q.dtype)


def reference(q, k, v, wq_t, wk_t, wv_t, n_dim):
    # pure-JAX f32 reference matching the PyTorch module semantics
    qp = q @ wq_t
    kp = k @ wk_t
    vp = v @ wv_t
    attn = jax.nn.softmax(
        jnp.einsum("bqd,bkd->bqk", qp, kp) / math.sqrt(n_dim), axis=-1
    )
    return jnp.einsum("bqk,bkd->bqd", attn, vp)


if __name__ == "__main__":
    B, S, D = 2, 8, 32  # batch, sequence length, n_dim

    key = jax.random.PRNGKey(0)
    kq, kk, kv, kwq, kwk, kwv = jax.random.split(key, 6)

    q = jax.random.normal(kq, (B, S, D), dtype=jnp.float32)
    k = jax.random.normal(kk, (B, S, D), dtype=jnp.float32)
    v = jax.random.normal(kv, (B, S, D), dtype=jnp.float32)

    # nn.Linear(n_dim, n_dim, bias=False): weight W is (out, in), y = x @ W.T.
    # We deterministically init W and pass W.T = (in, out) to the kernel.
    bound = 1.0 / math.sqrt(D)
    wq = jax.random.uniform(kwq, (D, D), jnp.float32, -bound, bound)
    wk = jax.random.uniform(kwk, (D, D), jnp.float32, -bound, bound)
    wv = jax.random.uniform(kwv, (D, D), jnp.float32, -bound, bound)
    wq_t, wk_t, wv_t = wq.T, wk.T, wv.T

    out = attention(q, k, v, wq_t, wk_t, wv_t)
    out = jax.block_until_ready(out)

    ref = reference(q, k, v, wq_t, wk_t, wv_t, D)
    assert out.shape == (B, S, D)
    # bf16 MXU operands + approx reciprocal -> loosened tolerance vs f32 ref.
    assert jnp.allclose(out, ref, atol=3e-2, rtol=3e-2), "mismatch vs reference"

    print("KERNEL_OK")
</pallas_src>

<mosaic_0001>
module attributes {stable_mosaic.version = 11 : i64} {
  func.func @_project_kv_kernel(%arg0: i32, %arg1: memref<16x32xf32, #tpu.memory_space<vmem>>, %arg2: memref<16x32xf32, #tpu.memory_space<vmem>>, %arg3: memref<32x32xbf16, #tpu.memory_space<vmem>>, %arg4: memref<32x32xbf16, #tpu.memory_space<vmem>>, %arg5: memref<16x32xbf16, #tpu.memory_space<vmem>>, %arg6: memref<16x32xbf16, #tpu.memory_space<vmem>>) attributes {dimension_semantics = [#tpu.dimension_semantics<parallel>], iteration_bounds = array<i64: 1>, scalar_prefetch = 0 : i64, scratch_operands = 0 : i64, tpu.core_type = #tpu.core_type<tc>, window_params = [{transform_indices = @transform_0, window_bounds = array<i64: 16, 32>}, {transform_indices = @transform_1, window_bounds = array<i64: 16, 32>}, {pipeline_mode = #tpu.pipeline_mode<synchronous>, transform_indices = @transform_2, window_bounds = array<i64: 32, 32>}, {pipeline_mode = #tpu.pipeline_mode<synchronous>, transform_indices = @transform_3, window_bounds = array<i64: 32, 32>}, {transform_indices = @transform_4, window_bounds = array<i64: 16, 32>}, {transform_indices = @transform_5, window_bounds = array<i64: 16, 32>}]} {
    %c0 = arith.constant 0 : index
    %c0_0 = arith.constant 0 : index
    %0 = vector.load %arg1[%c0, %c0_0] : memref<16x32xf32, #tpu.memory_space<vmem>>, vector<16x32xf32>
    %1 = arith.truncf %0 : vector<16x32xf32> to vector<16x32xbf16>
    %c0_1 = arith.constant 0 : index
    %c0_2 = arith.constant 0 : index
    %2 = vector.load %arg2[%c0_1, %c0_2] : memref<16x32xf32, #tpu.memory_space<vmem>>, vector<16x32xf32>
    %3 = arith.truncf %2 : vector<16x32xf32> to vector<16x32xbf16>
    %c0_3 = arith.constant 0 : index
    %c0_4 = arith.constant 0 : index
    %4 = vector.load %arg3[%c0_3, %c0_4] : memref<32x32xbf16, #tpu.memory_space<vmem>>, vector<32x32xbf16>
    %cst = arith.constant dense<0.000000e+00> : vector<16x32xf32>
    %5 = tpu.matmul %1, %4, %cst {dimension_numbers = #tpu.dot_dimension_numbers<[1], [0], [0], [1], [0, 0, 1, 1], [], []>} : vector<16x32xbf16>, vector<32x32xbf16>, vector<16x32xf32> -> vector<16x32xf32>
    %6 = arith.truncf %5 : vector<16x32xf32> to vector<16x32xbf16>
    %c0_5 = arith.constant 0 : index
    %c0_6 = arith.constant 0 : index
    %7 = vector.load %arg5[%c0_5, %c0_6] : memref<16x32xbf16, #tpu.memory_space<vmem>>, vector<16x32xbf16>
    tpu.vector_store %arg5[%c0_5, %c0_6], %6 {strides = array<i32>} : memref<16x32xbf16, #tpu.memory_space<vmem>>, vector<16x32xbf16>,
    %c0_7 = arith.constant 0 : index
    %c0_8 = arith.constant 0 : index
    %8 = vector.load %arg4[%c0_7, %c0_8] : memref<32x32xbf16, #tpu.memory_space<vmem>>, vector<32x32xbf16>
    %cst_9 = arith.constant dense<0.000000e+00> : vector<16x32xf32>
    %9 = tpu.matmul %3, %8, %cst_9 {dimension_numbers = #tpu.dot_dimension_numbers<[1], [0], [0], [1], [0, 0, 1, 1], [], []>} : vector<16x32xbf16>, vector<32x32xbf16>, vector<16x32xf32> -> vector<16x32xf32>
    %10 = arith.truncf %9 : vector<16x32xf32> to vector<16x32xbf16>
    %c0_10 = arith.constant 0 : index
    %c0_11 = arith.constant 0 : index
    %11 = vector.load %arg6[%c0_10, %c0_11] : memref<16x32xbf16, #tpu.memory_space<vmem>>, vector<16x32xbf16>
    tpu.vector_store %arg6[%c0_10, %c0_11], %10 {strides = array<i32>} : memref<16x32xbf16, #tpu.memory_space<vmem>>, vector<16x32xbf16>,
    return
  }
  func.func @transform_0(%arg0: i32) -> (i32, i32) {
    %c0_i32 = arith.constant 0 : i32
    %c0_i32_0 = arith.constant 0 : i32
    return %arg0, %c0_i32 : i32, i32
  }
  func.func @transform_1(%arg0: i32) -> (i32, i32) {
    %c0_i32 = arith.constant 0 : i32
    %c0_i32_0 = arith.constant 0 : i32
    return %arg0, %c0_i32 : i32, i32
  }
  func.func @transform_2(%arg0: i32) -> (i32, i32) {
    %c0_i32 = arith.constant 0 : i32
    %c0_i32_0 = arith.constant 0 : i32
    %c0_i32_1 = arith.constant 0 : i32
    return %c0_i32, %c0_i32_0 : i32, i32
  }
  func.func @transform_3(%arg0: i32) -> (i32, i32) {
    %c0_i32 = arith.constant 0 : i32
    %c0_i32_0 = arith.constant 0 : i32
    %c0_i32_1 = arith.constant 0 : i32
    return %c0_i32, %c0_i32_0 : i32, i32
  }
  func.func @transform_4(%arg0: i32) -> (i32, i32) {
    %c0_i32 = arith.constant 0 : i32
    %c0_i32_0 = arith.constant 0 : i32
    return %arg0, %c0_i32 : i32, i32
  }
  func.func @transform_5(%arg0: i32) -> (i32, i32) {
    %c0_i32 = arith.constant 0 : i32
    %c0_i32_0 = arith.constant 0 : i32
    return %arg0, %c0_i32 : i32, i32
  }
}

</mosaic_0001>

<llo_original>
// kernel: tpu_custom_call.1
$region0: #{tpu_custom_call.1}
  #allocation0 [shape = 'u32[]', space=smem, size = 0x4, offset = 0x4, fixed_abs, tag = 'smem constant byte address 0x4 - core index']
  #allocation1 [shape = 'u32[72,128]{1,0:T(1,128)}', space=vmem, size = 0x9000, scoped, tag = 'internal scratch']
  %s0 = inlined_call_operand.hbm [shape: f32[16,32], index: 0, kind: input, shape index: {}]
  %s1 = inlined_call_operand.hbm [shape: f32[16,32], index: 1, kind: input, shape index: {}]
  %s2 = inlined_call_operand.hbm [shape: bf16[32,32], index: 2, kind: input, shape index: {}]
  %s3 = inlined_call_operand.hbm [shape: bf16[32,32], index: 3, kind: input, shape index: {}]
  %s4 = inlined_call_operand.hbm [shape: bf16[16,32], index: 4, kind: output, shape index: {0}]
  %s5 = inlined_call_operand.hbm [shape: bf16[16,32], index: 5, kind: output, shape index: {1}]
  %6 = xla_tuple %s4, %s5
  %s7 = sld [smem:[#allocation0]]
  $region50: #{tpu_custom_call.1} parent=0
    _
  %s9 = ssub.s32 1, %s7
  %s10 = scalar_select 0, %s9, %s7
  $region1: #{tpu_custom_call.1} parent=0
    #allocation2 [shape = 'u8[8192]{0}', space=vmem, size = 0x2000, scoped, tag = 'input window, operand 0, single buffered']
    #allocation3 [shape = 's32[1]{0}', space=sflag, size = 0x4, scoped, tag = 'scoped memory for tpu_custom_call.1']
    #allocation4 [shape = 's32[1]{0}', space=sflag, size = 0x4, scoped, tag = 'scoped memory for tpu_custom_call.1']
    #allocation5 [shape = 'u8[8192]{0}', space=vmem, size = 0x2000, scoped, tag = 'input window, operand 1, single buffered']
    #allocation6 [shape = 's32[1]{0}', space=sflag, size = 0x4, scoped, tag = 'scoped memory for tpu_custom_call.1']
    #allocation7 [shape = 'u8[8192]{0}', space=vmem, size = 0x2000, scoped, tag = 'input window, operand 2, single buffered']
    #allocation8 [shape = 'u8[8192]{0}', space=vmem, size = 0x2000, scoped, tag = 'input window, operand 3, single buffered']
    #allocation9 [shape = 's32[1]{0}', space=sflag, size = 0x4, scoped, tag = 'scoped memory for tpu_custom_call.1']
    #allocation10 [shape = 'u8[4096]{0}', space=vmem, size = 0x1000, scoped, tag = 'output window, operand 0, single buffered']
    #allocation11 [shape = 'u8[4096]{0}', space=vmem, size = 0x1000, scoped, tag = 'output window, operand 1, single buffered']
    #allocation12 [shape = 's32[1]{0}', space=sflag, size = 0x4, scoped, tag = 'scoped memory for tpu_custom_call.1']
    %11 = vsyncpa [#allocation3], 0
    %12 = vsyncpa [#allocation6], 0
    %13 = vsyncpa [#allocation9], 0
    %14 = vsyncpa [#allocation4], 0
    %15 = vsyncpa [#allocation12], 0
    // Predicated region
    $region2: #{tpu_custom_call.1} parent=1 // pred_check
      _
    $region3: #{tpu_custom_call.1} parent=1 // pred_check_branch
      %17 = sbr.rel (0) target = $region5
    $region4: #{tpu_custom_call.1} parent=1 // pred_region
      %19 = vsyncadd [#allocation3], 0
      %s20 = sshll.u32 %s0, 4
      %s21 = int_to_ptr.hbm [resolvable:$true] %s20
      %s22 = sshll.u32 [#allocation2], 4
      %s23 = int_to_ptr.vmem [resolvable:$true] %s22
      %28 = dma.hbm_to_vmem [thread:$0]  %s21, 256, %s23, [#allocation3], 128, 128, 8
    $region5: #{tpu_custom_call.1} parent=1 // pred_fallthru
      _
    // Predicated region
    $region6: #{tpu_custom_call.1} parent=1 // pred_check
      _
    $region7: #{tpu_custom_call.1} parent=1 // pred_check_branch
      %30 = sbr.rel (0) target = $region9
    $region8: #{tpu_custom_call.1} parent=1 // pred_region
      %32 = vsyncadd [#allocation6], 0
      %s33 = sshll.u32 %s1, 4
      %s34 = int_to_ptr.hbm [resolvable:$true] %s33
      %s35 = sshll.u32 [#allocation5], 4
      %s36 = int_to_ptr.vmem [resolvable:$true] %s35
      %41 = dma.hbm_to_vmem [thread:$0]  %s34, 256, %s36, [#allocation6], 128, 128, 8
    $region9: #{tpu_custom_call.1} parent=1 // pred_fallthru
      _
    // Predicated region
    $region10: #{tpu_custom_call.1} parent=1 // pred_check
      _
    $region11: #{tpu_custom_call.1} parent=1 // pred_check_branch
      %43 = sbr.rel (0) target = $region13
    $region12: #{tpu_custom_call.1} parent=1 // pred_region
      %45 = vsyncadd [#allocation6], 0
      %s46 = sshll.u32 %s2, 4
      %s47 = int_to_ptr.hbm [resolvable:$true] %s46
      %s48 = sshll.u32 [#allocation7], 4
      %s49 = int_to_ptr.vmem [resolvable:$true] %s48
      %54 = dma.hbm_to_vmem [thread:$0]  %s47, 256, %s49, [#allocation6], 64, 64, 4
    $region13: #{tpu_custom_call.1} parent=1 // pred_fallthru
      _
    // Predicated region
    $region14: #{tpu_custom_call.1} parent=1 // pred_check
      _
    $region15: #{tpu_custom_call.1} parent=1 // pred_check_branch
      %56 = sbr.rel (0) target = $region17
    $region16: #{tpu_custom_call.1} parent=1 // pred_region
      %58 = vsyncadd [#allocation9], 0
      %s59 = sshll.u32 %s3, 4
      %s60 = int_to_ptr.hbm [resolvable:$true] %s59
      %s61 = sshll.u32 [#allocation8], 4
      %s62 = int_to_ptr.vmem [resolvable:$true] %s61
      %67 = dma.hbm_to_vmem [thread:$0]  %s60, 256, %s62, [#allocation9], 64, 64, 4
    $region17: #{tpu_custom_call.1} parent=1 // pred_fallthru
      _
    // Predicated region
    $region18: #{tpu_custom_call.1} parent=1 // pred_check
      _
    $region19: #{tpu_custom_call.1} parent=1 // pred_check_branch
      %69 = sbr.rel (0) target = $region21
    $region20: #{tpu_custom_call.1} parent=1 // pred_region
      %71 = dma.done [#allocation3], 256
    $region21: #{tpu_custom_call.1} parent=1 // pred_fallthru
      _
    // Predicated region
    $region22: #{tpu_custom_call.1} parent=1 // pred_check
      _
    $region23: #{tpu_custom_call.1} parent=1 // pred_check_branch
      %73 = sbr.rel (0) target = $region25
    $region24: #{tpu_custom_call.1} parent=1 // pred_region
      %75 = dma.done [#allocation6], 256
    $region25: #{tpu_custom_call.1} parent=1 // pred_fallthru
      _
    // Predicated region
    $region26: #{tpu_custom_call.1} parent=1 // pred_check
      _
    $region27: #{tpu_custom_call.1} parent=1 // pred_check_branch
      %77 = sbr.rel (0) target = $region29
    $region28: #{tpu_custom_call.1} parent=1 // pred_region
      %79 = dma.done [#allocation6], 256
    $region29: #{tpu_custom_call.1} parent=1 // pred_fallthru
      _
    // Predicated region
    $region30: #{tpu_custom_call.1} parent=1 // pred_check
      _
    $region31: #{tpu_custom_call.1} parent=1 // pred_check_branch
      %81 = sbr.rel (0) target = $region33
    $region32: #{tpu_custom_call.1} parent=1 // pred_region
      %83 = dma.done [#allocation9], 256
    $region33: #{tpu_custom_call.1} parent=1 // pred_fallthru
      _
    %v85 = vld [vmem:[#allocation2] sm:$0xff]
    %v86 = vld [vmem:[#allocation2 + $0x8] sm:$0xff]
    %v87 = vpack.c.bf16 %v86, %v85
    %v88 = vld [vmem:[#allocation5] sm:$0xff]
    %v89 = vld [vmem:[#allocation5 + $0x8] sm:$0xff]
    %v90 = vpack.c.bf16 %v89, %v88
    %v91 = vld [vmem:[#allocation7] sm:$0xf]
    %v92 = vld [vmem:[#allocation7 + $0x4] sm:$0xf]
    %v93 = vld [vmem:[#allocation7 + $0x8] sm:$0xf]
    %v94 = vld [vmem:[#allocation7 + $0xc] sm:$0xf]
    %v99 = vunpack.c.l.b16 %v91
    %v100 = vunpack.c.l.b16 %v92
    %v101 = vunpack.c.l.b16 %v93
    %v102 = vunpack.c.l.b16 %v94
    %v103 = vpack.c.b16 %v100, %v99
    %v104 = vpack.c.b16 %v102, %v101
    %vm107 = vcmask 261120
    %v109 = vsel %vm107, %v87, 0
    %111 = vmatpush.bf16.msra.mxu0 0
    %112 = vmatpush.bf16.msra.mxu0 0
    %113 = vmatpush.bf16.msra.mxu0 0
    %114 = vmatpush.bf16.msra.mxu0 0
    %115 = vmatpush.bf16.msra.mxu0 0
    %116 = vmatpush.bf16.msra.mxu0 0
    %117 = vmatpush.bf16.msra.mxu0 %v104
    %118 = vmatpush.bf16.msra.mxu0 %v103
    %119 = vmatmul.bf16.gmra.mxu0 %v109
    %v120 = vpop.f32.mrf.mxu0
    %v121 = vadd.f32 0.0, %v120
    %v122 = vpop.f32.mrf.mxu0
    %v123 = vadd.f32 0.0, %v122
    %124 = vdwg.mxu0
    %v125 = vpack.c.bf16 %v121, %v121
    %v126 = vpack.c.bf16 %v123, %v123
    %vm127 = vcmask 257024
    %128 = vst.msk [vmem:[#allocation10] sm:$0xf] %vm127, %v125
    %129 = vst.msk [vmem:[#allocation10 + $0x4] sm:$0xf] %vm127, %v126
    %v130 = vld [vmem:[#allocation8] sm:$0xf]
    %v131 = vld [vmem:[#allocation8 + $0x4] sm:$0xf]
    %v132 = vld [vmem:[#allocation8 + $0x8] sm:$0xf]
    %v133 = vld [vmem:[#allocation8 + $0xc] sm:$0xf]
    %v138 = vunpack.c.l.b16 %v130
    %v139 = vunpack.c.l.b16 %v131
    %v140 = vunpack.c.l.b16 %v132
    %v141 = vunpack.c.l.b16 %v133
    %v142 = vpack.c.b16 %v139, %v138
    %v143 = vpack.c.b16 %v141, %v140
    %v147 = vsel %vm107, %v90, 0
    %149 = vmatpush.bf16.msra.mxu0 0
    %150 = vmatpush.bf16.msra.mxu0 0
    %151 = vmatpush.bf16.msra.mxu0 0
    %152 = vmatpush.bf16.msra.mxu0 0
    %153 = vmatpush.bf16.msra.mxu0 0
    %154 = vmatpush.bf16.msra.mxu0 0
    %155 = vmatpush.bf16.msra.mxu0 %v143
    %156 = vmatpush.bf16.msra.mxu0 %v142
    %157 = vmatmul.bf16.gmra.mxu0 %v147
    %v158 = vpop.f32.mrf.mxu0
    %v159 = vadd.f32 0.0, %v158
    %v160 = vpop.f32.mrf.mxu0
    %v161 = vadd.f32 0.0, %v160
    %162 = vdwg.mxu0
    %v163 = vpack.c.bf16 %v159, %v159
    %v164 = vpack.c.bf16 %v161, %v161
    %165 = vst.msk [vmem:[#allocation11] sm:$0xf] %vm127, %v163
    %166 = vst.msk [vmem:[#allocation11 + $0x4] sm:$0xf] %vm127, %v164
    // Predicated region
    $region34: #{tpu_custom_call.1} parent=1 // pred_check
      _
    $region35: #{tpu_custom_call.1} parent=1 // pred_check_branch
      %168 = sbr.rel (0) target = $region37
    $region36: #{tpu_custom_call.1} parent=1 // pred_region
      %170 = vsyncadd [#allocation4], 0
      %s171 = sshll.u32 [#allocation10], 4
      %s172 = int_to_ptr.vmem [resolvable:$true] %s171
      %s173 = sshll.u32 %s4, 4
      %s174 = int_to_ptr.hbm [resolvable:$true] %s173
      %179 = dma.vmem_to_hbm [thread:$0]  %s172, 128, %s174, [#allocation4], 64, 64, 4
    $region37: #{tpu_custom_call.1} parent=1 // pred_fallthru
      _
    // Predicated region
    $region38: #{tpu_custom_call.1} parent=1 // pred_check
      _
    $region39: #{tpu_custom_call.1} parent=1 // pred_check_branch
      %181 = sbr.rel (0) target = $region41
    $region40: #{tpu_custom_call.1} parent=1 // pred_region
      %183 = vsyncadd [#allocation12], 0
      %s184 = sshll.u32 [#allocation11], 4
      %s185 = int_to_ptr.vmem [resolvable:$true] %s184
      %s186 = sshll.u32 %s5, 4
      %s187 = int_to_ptr.hbm [resolvable:$true] %s186
      %192 = dma.vmem_to_hbm [thread:$0]  %s185, 128, %s187, [#allocation12], 64, 64, 4
    $region41: #{tpu_custom_call.1} parent=1 // pred_fallthru
      _
    // Predicated region
    $region42: #{tpu_custom_call.1} parent=1 // pred_check
      _
    $region43: #{tpu_custom_call.1} parent=1 // pred_check_branch
      %194 = sbr.rel (0) target = $region45
    $region44: #{tpu_custom_call.1} parent=1 // pred_region
      %196 = dma.done [#allocation4], 128
    $region45: #{tpu_custom_call.1} parent=1 // pred_fallthru
      _
    // Predicated region
    $region46: #{tpu_custom_call.1} parent=1 // pred_check
      _
    $region47: #{tpu_custom_call.1} parent=1 // pred_check_branch
      %198 = sbr.rel (0) target = $region49
    $region48: #{tpu_custom_call.1} parent=1 // pred_region
      %200 = dma.done [#allocation12], 128
    $region49: #{tpu_custom_call.1} parent=1 // pred_fallthru
      _
    %201 = vsyncpa [#allocation3], 1
    %202 = vsyncpa [#allocation6], 1
    %203 = vsyncpa [#allocation9], 1
    %204 = vsyncpa [#allocation4], 1
    %205 = vsyncpa [#allocation12], 1

</llo_original>
